<compile_context>
chip_gen: v7x
topology: tpu7x:2x2x1
jax: 0.10.0
libtpu: 0.0.40
codegen_flags: <defaults>
</compile_context>

<pallas_src>
import jax
import jax.numpy as jnp
from jax import lax
from jax.experimental import pallas as pl
from jax.experimental.pallas import tpu as pltpu


def _aautosig_fused_kernel(x_ref, w_ref, o_ref):
    # x_ref: (tb, 96) batch tile   w_ref: (96, 96) fused weight, (out, in) layout
    # Single MXU matmul contracting the last axis of W ("trans_b"), f32 accumulation.
    out = lax.dot_general(
        x_ref[...], w_ref[...],
        dimension_numbers=(((1,), (1,)), ((), ())),
        preferred_element_type=jnp.float32)              # (tb, 96)
    o_ref[...] = out.astype(o_ref.dtype)                 # optional bf16 store (in-kernel only)


def _per_generation_defaults():
    """(block_b, vmem_limit_bytes) derived from lane-padded tile sizes."""
    kind = ""
    try:
        kind = jax.devices()[0].device_kind.lower()
    except Exception:
        pass
    if "v5" in kind:
        return 8192, 64 << 20
    if "v6" in kind:
        return 32768, 96 << 20
    if "v7" in kind:
        return 16384, 48 << 20
    # Unknown generation: conservative (fits every scoped-VMEM budget).
    return 8192, 48 << 20


def aautosig_forward(x, enc1_weight, dec1_weight, *,
                     block_b=None, out_dtype=None, vmem_limit_bytes=None):
    """Forward of AAUtoSig: x @ enc1.weight.T @ dec1.weight.T (no biases).

    x:            (B, 96)      activations; passed to the kernel UNCAST (no extra HBM pass)
    enc1_weight:  (dim1, 96)   torch.nn.Linear(96, dim1).weight layout
    dec1_weight:  (96, dim1)   torch.nn.Linear(dim1, 96).weight layout
    block_b:      batch tile size (default: per-TPU-generation)
    out_dtype:    optional output dtype (e.g. jnp.bfloat16) cast inside the kernel
    """
    B, F_in = x.shape
    dim1 = enc1_weight.shape[0]
    assert enc1_weight.shape == (dim1, F_in)
    assert dec1_weight.shape == (F_in, dim1)

    def_bb, def_vmem = _per_generation_defaults()
    if block_b is None:
        block_b = def_bb
    if vmem_limit_bytes is None:
        vmem_limit_bytes = def_vmem
    if out_dtype is None:
        out_dtype = x.dtype

    # Exact fusion of the two bias-free linears: W = dec1 @ enc1, shape (96, 96),
    # one-time tiny matmul outside the kernel (negligible vs. the B*96 streams).
    w = jnp.dot(dec1_weight.astype(jnp.float32), enc1_weight.astype(jnp.float32),
                precision=lax.Precision.HIGHEST).astype(x.dtype)

    # Batch tile: full batch when small (always legal); otherwise a multiple of 8
    # to satisfy the (8, 128) sublane constraint. 96 == full feature dim -> legal.
    if block_b >= B:
        tb = B
    else:
        tb = max(8, (block_b // 8) * 8)
    grid = (pl.cdiv(B, tb),)    # ragged last tile: OOB output rows masked by Pallas

    cost = pl.CostEstimate(
        flops=2 * B * F_in * F_in,
        transcendentals=0,
        bytes_accessed=(B * F_in * (x.dtype.itemsize + jnp.dtype(out_dtype).itemsize)
                        + F_in * F_in * w.dtype.itemsize))

    return pl.pallas_call(
        _aautosig_fused_kernel,
        out_shape=jax.ShapeDtypeStruct((B, F_in), out_dtype),
        grid=grid,
        in_specs=[
            # batch-tiled activations: pipelined / double-buffered by Pallas
            pl.BlockSpec((tb, F_in), lambda i: (i, 0)),
            # fused weight: constant block index -> fetched once, VMEM-resident
            pl.BlockSpec((F_in, F_in), lambda i: (0, 0)),
        ],
        out_specs=pl.BlockSpec((tb, F_in), lambda i: (i, 0)),
        compiler_params=pltpu.CompilerParams(
            # independent batch tiles -> shard across v7x's 2 TensorCores
            # (no-op on single-TC v5e/v6e)
            dimension_semantics=("parallel",),
            vmem_limit_bytes=vmem_limit_bytes),
        cost_estimate=cost,
    )(x, w)


if __name__ == "__main__":
    key = jax.random.PRNGKey(0)
    k_x, k_x2, k_we, k_wd = jax.random.split(key, 4)

    batch = 8
    dim1 = 32     # latent dimension (constructor arg of AAUtoSig)
    feat = 96     # fixed by the module definition

    x = jax.random.normal(k_x, (batch, feat), dtype=jnp.float32)
    bound_e = 1.0 / jnp.sqrt(feat)
    bound_d = 1.0 / jnp.sqrt(dim1)
    enc1_w = jax.random.uniform(k_we, (dim1, feat), jnp.float32,
                                minval=-bound_e, maxval=bound_e)
    dec1_w = jax.random.uniform(k_wd, (feat, dim1), jnp.float32,
                                minval=-bound_d, maxval=bound_d)

    def ref_fwd(xv):
        h = jnp.einsum("bf,df->bd", xv, enc1_w, precision=lax.Precision.HIGHEST)
        return jnp.einsum("bd,fd->bf", h, dec1_w, precision=lax.Precision.HIGHEST)

    # 1) f32 path, single batch tile (fused W, reassociation covered by tolerance).
    out = jax.block_until_ready(aautosig_forward(x, enc1_w, dec1_w))
    assert out.shape == (batch, feat)
    assert out.dtype == jnp.float32
    assert jnp.allclose(out, ref_fwd(x), atol=1e-4, rtol=1e-4)

    # 2) multi-tile path: exercises the batch grid, pipelining and the
    #    VMEM-resident (constant index_map) fused-weight block. grid = (3,).
    x2 = jax.random.normal(k_x2, (24, feat), dtype=jnp.float32)
    out2 = jax.block_until_ready(aautosig_forward(x2, enc1_w, dec1_w, block_b=8))
    assert out2.shape == (24, feat)
    assert jnp.allclose(out2, ref_fwd(x2), atol=1e-4, rtol=1e-4)

    # 3) bf16 OUTPUT path: x stays f32 (no wrapper-side cast / extra HBM pass);
    #    only the store inside the kernel is bf16 (~25% HBM traffic saved).
    out_bf16 = jax.block_until_ready(
        aautosig_forward(x, enc1_w, dec1_w, out_dtype=jnp.bfloat16))
    assert out_bf16.shape == (batch, feat)
    assert out_bf16.dtype == jnp.bfloat16
    assert jnp.allclose(out_bf16.astype(jnp.float32), ref_fwd(x),
                        atol=2e-2, rtol=2e-2)

    print("KERNEL_OK")
</pallas_src>

<mosaic_0001>
module attributes {stable_mosaic.version = 11 : i64} {
  func.func @_aautosig_fused_kernel(%arg0: i32, %arg1: memref<8x96xf32, #tpu.memory_space<vmem>>, %arg2: memref<96x96xf32, #tpu.memory_space<vmem>>, %arg3: memref<8x96xf32, #tpu.memory_space<vmem>>) attributes {dimension_semantics = [#tpu.dimension_semantics<parallel>], iteration_bounds = array<i64: 1>, scalar_prefetch = 0 : i64, scratch_operands = 0 : i64, tpu.core_type = #tpu.core_type<tc>, window_params = [{transform_indices = @transform_0, window_bounds = array<i64: 8, 96>}, {pipeline_mode = #tpu.pipeline_mode<synchronous>, transform_indices = @transform_1, window_bounds = array<i64: 96, 96>}, {transform_indices = @transform_2, window_bounds = array<i64: 8, 96>}]} {
    %c0 = arith.constant 0 : index
    %c0_0 = arith.constant 0 : index
    %0 = vector.load %arg1[%c0, %c0_0] : memref<8x96xf32, #tpu.memory_space<vmem>>, vector<8x96xf32>
    %c0_1 = arith.constant 0 : index
    %c0_2 = arith.constant 0 : index
    %1 = vector.load %arg2[%c0_1, %c0_2] : memref<96x96xf32, #tpu.memory_space<vmem>>, vector<96x96xf32>
    %cst = arith.constant dense<0.000000e+00> : vector<8x96xf32>
    %2 = tpu.matmul %0, %1, %cst {dimension_numbers = #tpu.dot_dimension_numbers<[1], [1], [0], [0], [0, 0, 1, 0], [], []>} : vector<8x96xf32>, vector<96x96xf32>, vector<8x96xf32> -> vector<8x96xf32>
    %c0_3 = arith.constant 0 : index
    %c0_4 = arith.constant 0 : index
    %3 = vector.load %arg3[%c0_3, %c0_4] : memref<8x96xf32, #tpu.memory_space<vmem>>, vector<8x96xf32>
    tpu.vector_store %arg3[%c0_3, %c0_4], %2 {strides = array<i32>} : memref<8x96xf32, #tpu.memory_space<vmem>>, vector<8x96xf32>,
    return
  }
  func.func @transform_0(%arg0: i32) -> (i32, i32) {
    %c0_i32 = arith.constant 0 : i32
    %c0_i32_0 = arith.constant 0 : i32
    return %arg0, %c0_i32 : i32, i32
  }
  func.func @transform_1(%arg0: i32) -> (i32, i32) {
    %c0_i32 = arith.constant 0 : i32
    %c0_i32_0 = arith.constant 0 : i32
    %c0_i32_1 = arith.constant 0 : i32
    return %c0_i32, %c0_i32_0 : i32, i32
  }
  func.func @transform_2(%arg0: i32) -> (i32, i32) {
    %c0_i32 = arith.constant 0 : i32
    %c0_i32_0 = arith.constant 0 : i32
    return %arg0, %c0_i32 : i32, i32
  }
}

</mosaic_0001>

<llo_original>
// kernel: tpu_custom_call.1
$region0: #{tpu_custom_call.1}
  #allocation0 [shape = 'u32[]', space=smem, size = 0x4, offset = 0x4, fixed_abs, tag = 'smem constant byte address 0x4 - core index']
  #allocation1 [shape = 'u32[144,128]{1,0:T(1,128)}', space=vmem, size = 0x12000, scoped, tag = 'internal scratch']
  %s0 = inlined_call_operand.hbm [shape: f32[8,96], index: 0, kind: input, shape index: {}]
  %s1 = inlined_call_operand.hbm [shape: f32[96,96], index: 1, kind: input, shape index: {}]
  %s2 = inlined_call_operand.hbm [shape: f32[8,96], index: 2, kind: output, shape index: {}]
  %s3 = sld [smem:[#allocation0]]
  $region26: #{tpu_custom_call.1} parent=0
    _
  %s5 = ssub.s32 1, %s3
  %s6 = scalar_select 0, %s5, %s3
  $region1: #{tpu_custom_call.1} parent=0
    #allocation2 [shape = 'u8[4096]{0}', space=vmem, size = 0x1000, scoped, tag = 'input window, operand 0, single buffered']
    #allocation3 [shape = 's32[1]{0}', space=sflag, size = 0x4, scoped, tag = 'scoped memory for tpu_custom_call.1']
    #allocation4 [shape = 's32[1]{0}', space=sflag, size = 0x4, scoped, tag = 'scoped memory for tpu_custom_call.1']
    #allocation5 [shape = 'u8[49152]{0}', space=vmem, size = 0xc000, scoped, tag = 'input window, operand 1, single buffered']
    #allocation6 [shape = 's32[1]{0}', space=sflag, size = 0x4, scoped, tag = 'scoped memory for tpu_custom_call.1']
    #allocation7 [shape = 'u8[4096]{0}', space=vmem, size = 0x1000, scoped, tag = 'output window, operand 0, single buffered']
    %7 = vsyncpa [#allocation3], 0
    %8 = vsyncpa [#allocation6], 0
    %9 = vsyncpa [#allocation4], 0
    // Predicated region
    $region2: #{tpu_custom_call.1} parent=1 // pred_check
      _
    $region3: #{tpu_custom_call.1} parent=1 // pred_check_branch
      %11 = sbr.rel (0) target = $region5
    $region4: #{tpu_custom_call.1} parent=1 // pred_region
      %s13 = ssub.s32 128, 128
      %14 = vsyncadd [#allocation3], %s13
      %s16 = sshll.u32 [#allocation2], 4
      %s17 = int_to_ptr.vmem [resolvable:$true] %s16
      %19 = dma.hbm_to_vmem [thread:$0]  %s0, 128, %s17, [#allocation3]
    $region5: #{tpu_custom_call.1} parent=1 // pred_fallthru
      _
    // Predicated region
    $region6: #{tpu_custom_call.1} parent=1 // pred_check
      _
    $region7: #{tpu_custom_call.1} parent=1 // pred_check_branch
      %21 = sbr.rel (0) target = $region9
    $region8: #{tpu_custom_call.1} parent=1 // pred_region
      %s23 = ssub.s32 1536, 1536
      %24 = vsyncadd [#allocation6], %s23
      %s25 = sshll.u32 [#allocation5], 4
      %s26 = int_to_ptr.vmem [resolvable:$true] %s25
      %31 = dma.hbm_to_vmem [thread:$0]  %s1, 1536, %s26, [#allocation6], 128, 128, 8
    $region9: #{tpu_custom_call.1} parent=1 // pred_fallthru
      _
    // Predicated region
    $region10: #{tpu_custom_call.1} parent=1 // pred_check
      _
    $region11: #{tpu_custom_call.1} parent=1 // pred_check_branch
      %33 = sbr.rel (0) target = $region13
    $region12: #{tpu_custom_call.1} parent=1 // pred_region
      %34 = dma.done [#allocation3], 128
    $region13: #{tpu_custom_call.1} parent=1 // pred_fallthru
      _
    // Predicated region
    $region14: #{tpu_custom_call.1} parent=1 // pred_check
      _
    $region15: #{tpu_custom_call.1} parent=1 // pred_check_branch
      %36 = sbr.rel (0) target = $region17
    $region16: #{tpu_custom_call.1} parent=1 // pred_region
      %37 = dma.done [#allocation6], 1536
    $region17: #{tpu_custom_call.1} parent=1 // pred_fallthru
      _
    %v38 = vld [vmem:[#allocation2] sm:$0xff]
    %v39 = vld [vmem:[#allocation5] sm:$0xff]
    %v40 = vld [vmem:[#allocation5 + $0x8] sm:$0xff]
    %v41 = vld [vmem:[#allocation5 + $0x10] sm:$0xff]
    %v42 = vld [vmem:[#allocation5 + $0x18] sm:$0xff]
    %v43 = vld [vmem:[#allocation5 + $0x20] sm:$0xff]
    %v44 = vld [vmem:[#allocation5 + $0x28] sm:$0xff]
    %v45 = vld [vmem:[#allocation5 + $0x30] sm:$0xff]
    %v46 = vld [vmem:[#allocation5 + $0x38] sm:$0xff]
    %v47 = vld [vmem:[#allocation5 + $0x40] sm:$0xff]
    %v48 = vld [vmem:[#allocation5 + $0x48] sm:$0xff]
    %v49 = vld [vmem:[#allocation5 + $0x50] sm:$0xff]
    %v50 = vld [vmem:[#allocation5 + $0x58] sm:$0xff]
    %vm51 = vcmask 785408
    %v53 = vsel %vm51, %v38, 0
    %v56 = vsel %vm51, %v39, 0
    %v59 = vsel %vm51, %v40, 0
    %v62 = vsel %vm51, %v41, 0
    %v65 = vsel %vm51, %v42, 0
    %v68 = vsel %vm51, %v43, 0
    %v71 = vsel %vm51, %v44, 0
    %v74 = vsel %vm51, %v45, 0
    %v77 = vsel %vm51, %v46, 0
    %v80 = vsel %vm51, %v47, 0
    %v83 = vsel %vm51, %v48, 0
    %v86 = vsel %vm51, %v49, 0
    %v89 = vsel %vm51, %v50, 0
    %91 = vmatprep.subr.mxu0 0.0
    %92 = vmatpush1.xpose.msra.mxu0 %v56
    %93 = vmatprep.subr.mxu0 0.0
    %94 = vmatpush1.xpose.msra.mxu0 %v59
    %95 = vmatprep.subr.mxu0 0.0
    %96 = vmatpush1.xpose.msra.mxu0 %v62
    %97 = vmatprep.subr.mxu0 0.0
    %98 = vmatpush1.xpose.msra.mxu0 %v65
    %99 = vmatprep.subr.mxu0 0.0
    %100 = vmatpush1.xpose.msra.mxu0 %v68
    %101 = vmatprep.subr.mxu0 0.0
    %102 = vmatpush1.xpose.msra.mxu0 %v71
    %103 = vmatprep.subr.mxu0 0.0
    %104 = vmatpush1.xpose.msra.mxu0 %v74
    %105 = vmatprep.subr.mxu0 0.0
    %106 = vmatpush1.xpose.msra.mxu0 %v77
    %107 = vmatprep.subr.mxu0 0.0
    %108 = vmatpush1.xpose.msra.mxu0 %v80
    %109 = vmatprep.subr.mxu0 0.0
    %110 = vmatpush1.xpose.msra.mxu0 %v83
    %111 = vmatprep.subr.mxu0 0.0
    %112 = vmatpush1.xpose.msra.mxu0 %v86
    %113 = vmatprep.subr.mxu0 0.0
    %114 = vmatpush1.xpose.msra.mxu0 %v89
    %115 = vmatprep.subr.mxu0 0.0
    %116 = vmatpush1.xpose.msra.mxu0 0.0
    %117 = vmatprep.subr.mxu0 0.0
    %118 = vmatpush1.xpose.msra.mxu0 0.0
    %119 = vmatprep.subr.mxu0 0.0
    %120 = vmatpush1.xpose.msra.mxu0 0.0
    %121 = vmatprep.subr.mxu0 0.0
    %122 = vmatpush1.xpose.msra.mxu0 0.0
    %123 = vmatprep.subr.mxu0 0.0
    %124 = vmatpush1.xpose.msra.mxu0 0.0
    %125 = vmatprep.subr.mxu0 0.0
    %126 = vmatpush1.xpose.msra.mxu0 0.0
    %127 = vmatprep.subr.mxu0 0.0
    %128 = vmatpush1.xpose.msra.mxu0 0.0
    %129 = vmatprep.subr.mxu0 0.0
    %130 = vmatpush1.xpose.msra.mxu0 0.0
    %131 = vmatprep.subr.mxu0 0.0
    %132 = vmatpush1.xpose.msra.mxu0 0.0
    %133 = vmatprep.subr.mxu0 0.0
    %134 = vmatpush1.xpose.msra.mxu0 0.0
    %135 = vmatprep.subr.mxu0 0.0
    %136 = vmatpush1.xpose.msra.mxu0 0.0
    %137 = vmatprep.subr.mxu0 0.0
    %138 = vmatpush1.xpose.msra.mxu0 0.0
    %139 = vmatprep.subr.mxu0 0.0
    %140 = vmatpush1.xpose.msra.mxu0 0.0
    %141 = vmatprep.subr.mxu0 0.0
    %142 = vmatpush1.xpose.msra.mxu0 0.0
    %143 = vmatprep.subr.mxu0 0.0
    %144 = vmatpush1.xpose.msra.mxu0 0.0
    %145 = vmatprep.subr.mxu0 0.0
    %146 = vmatpush1.xpose.msra.mxu0 0.0
    %147 = vmatprep.subr.mxu0 0.0
    %148 = vmatpush1.xpose.msra.mxu0 0.0
    %149 = vmatprep.subr.mxu0 0.0
    %150 = vmatpush1.xpose.msra.mxu0 0.0
    %151 = vmatprep.subr.mxu0 0.0
    %152 = vmatpush1.xpose.msra.mxu0 0.0
    %153 = vmatprep.subr.mxu0 0.0
    %154 = vmatpush1.xpose.msra.mxu0 0.0
    %155 = vmatprep.mubr.f32.mxu0 0.0
    %156 = vmatmul.mubr.f32.gmra.mrb[0].mxu0 %v53
    %v157 = vpop.f32.mrb[0].mxu0
    %v158 = vadd.f32 0.0, %v157
    %v159 = vpop.f32.mrb[0].mxu0
    %160 = vdwg.mxu0
    %161 = vst.msk [vmem:[#allocation7] sm:$0xff] %vm51, %v158
    // Predicated region
    $region18: #{tpu_custom_call.1} parent=1 // pred_check
      _
    $region19: #{tpu_custom_call.1} parent=1 // pred_check_branch
      %163 = sbr.rel (0) target = $region21
    $region20: #{tpu_custom_call.1} parent=1 // pred_region
      %s165 = ssub.s32 128, 128
      %166 = vsyncadd [#allocation4], %s165
      %s168 = sshll.u32 [#allocation7], 4
      %s169 = int_to_ptr.vmem [resolvable:$true] %s168
      %171 = dma.vmem_to_hbm [thread:$0]  %s169, 128, %s2, [#allocation4]
    $region21: #{tpu_custom_call.1} parent=1 // pred_fallthru
      _
    // Predicated region
    $region22: #{tpu_custom_call.1} parent=1 // pred_check
      _
    $region23: #{tpu_custom_call.1} parent=1 // pred_check_branch
      %173 = sbr.rel (0) target = $region25
    $region24: #{tpu_custom_call.1} parent=1 // pred_region
      %174 = dma.done [#allocation4], 128
    $region25: #{tpu_custom_call.1} parent=1 // pred_fallthru
      _
    %175 = vsyncpa [#allocation3], 1
    %176 = vsyncpa [#allocation6], 1
    %177 = vsyncpa [#allocation4], 1

</llo_original>
